<compile_context>
chip_gen: v6e
topology: v6e:2x2x1
jax: 0.10.0
libtpu: 0.0.40
codegen_flags: <defaults>
</compile_context>

<pallas_src>
import functools

import jax
import jax.numpy as jnp
from jax import lax
from jax.experimental import pallas as pl
from jax.experimental.pallas import tpu as pltpu

_LANES = 128
_MAX_TILE_ROWS = 512  # 512*128*4B = 256 KiB per f32 tile


def _round_up(x, m):
    return (x + m - 1) // m * m


def _saltpepper_kernel(seed_ref, x_ref, o_ref, *, salt_thr, flip_thr, tile_rows):
    """Counter-hash PRNG + integer-threshold select (salt / pepper / passthrough)."""
    t = pl.program_id(0)

    # Unique global element index per lane (independent of tiling) -> counter.
    row = lax.broadcasted_iota(jnp.int32, x_ref.shape, 0)
    lane = lax.broadcasted_iota(jnp.int32, x_ref.shape, 1)
    idx = ((t * tile_rows + row) * _LANES + lane).astype(jnp.uint32)

    # Mix in the user seed with a multiplicative constant so different seeds
    # give decorrelated streams (avoids seed+offset collisions).
    s = seed_ref[0].astype(jnp.uint32) * jnp.uint32(0x9E3779B9)
    h = idx ^ s
    # Integer avalanche finalizer (all cheap VPU int ops, no transcendentals).
    h = h ^ (h >> jnp.uint32(16))
    h = h * jnp.uint32(0x7FEB352D)
    h = h ^ (h >> jnp.uint32(15))
    h = h * jnp.uint32(0x846CA68B)
    h = h ^ (h >> jnp.uint32(16))

    # Top 24 bits as a uniform integer in [0, 2^24); compare against integer
    # thresholds directly (no float conversion, no unsigned compares needed).
    u = (h >> jnp.uint32(8)).astype(jnp.int32)

    x = x_ref[...]
    one = jnp.asarray(1.0, dtype=x.dtype)
    zero = jnp.asarray(0.0, dtype=x.dtype)
    # u < salt_thr            -> salt   (1.0)
    # salt_thr <= u < flip_thr -> pepper (0.0)
    # TODO(synk): skimage uses the image minimum (-1 for signed images) as the
    # pepper value; we assume inputs in [0, 1] so pepper = 0.0.
    out = jnp.where(u < salt_thr, one, jnp.where(u < flip_thr, zero, x))
    o_ref[...] = out


def salt_pepper(x, *, amount=0.02, salt_vs_pepper=0.5, seed=0):
    """Apply salt & pepper noise to a float image batch (any shape, NCHW expected)."""
    orig_shape = x.shape
    total = 1
    for d in orig_shape:
        total *= int(d)

    rows = -(-total // _LANES)                       # ceil-div
    tile_rows = min(_MAX_TILE_ROWS, _round_up(rows, 8))
    rows_padded = _round_up(rows, tile_rows)
    padded_total = rows_padded * _LANES

    flat = x.reshape(-1)
    if padded_total != total:
        # Padded tail is sliced off below, so garbage flips there cannot leak.
        flat = jnp.pad(flat, (0, padded_total - total))
    xr = flat.reshape(rows_padded, _LANES)

    # P(salt) = amount * salt_vs_pepper, P(pepper) = amount * (1 - salt_vs_pepper).
    salt_thr = int(amount * salt_vs_pepper * (1 << 24))
    flip_thr = int(amount * (1 << 24))

    kernel = functools.partial(
        _saltpepper_kernel,
        salt_thr=salt_thr,
        flip_thr=flip_thr,
        tile_rows=tile_rows,
    )

    seed_arr = jnp.array([seed], dtype=jnp.int32)

    out = pl.pallas_call(
        kernel,
        out_shape=jax.ShapeDtypeStruct((rows_padded, _LANES), x.dtype),
        grid_spec=pltpu.PrefetchScalarGridSpec(
            num_scalar_prefetch=1,
            grid=(rows_padded // tile_rows,),
            in_specs=[pl.BlockSpec((tile_rows, _LANES), lambda t, seed: (t, 0))],
            out_specs=pl.BlockSpec((tile_rows, _LANES), lambda t, seed: (t, 0)),
        ),
        compiler_params=pltpu.CompilerParams(
            dimension_semantics=("parallel",),
        ),
    )(seed_arr, xr)

    out_flat = out.reshape(-1)
    if padded_total != total:
        out_flat = out_flat[:total]
    return out_flat.reshape(orig_shape)


class SaltPepper:
    """JAX/Pallas equivalent of the PyTorch SaltPepper module."""

    def __init__(self, Amount):
        self.Amount = Amount  # kept for parity; forward hardcodes 0.02 like the original

    def __call__(self, noised_and_cover, *, seed=0):
        noised_image = noised_and_cover[0]
        noised_and_cover[0] = salt_pepper(noised_image, amount=0.02, seed=seed)
        return noised_and_cover


if __name__ == "__main__":
    key = jax.random.PRNGKey(0)
    k1, k2 = jax.random.split(key)
    noised = jax.random.uniform(k1, (2, 4, 16, 16), dtype=jnp.float32)
    cover = jax.random.uniform(k2, (2, 4, 16, 16), dtype=jnp.float32)

    layer = SaltPepper(Amount=0.02)
    out = layer([noised, cover], seed=0)
    result = jax.block_until_ready(out[0])

    assert result.shape == noised.shape and result.dtype == noised.dtype
    # Unmodified pixels must match the input exactly; flipped pixels are 0 or 1.
    changed = result != noised
    assert bool(jnp.all(jnp.where(changed, (result == 0.0) | (result == 1.0), True)))
    print("KERNEL_OK")
</pallas_src>

<mosaic_0001>
module attributes {stable_mosaic.version = 11 : i64} {
  func.func @_saltpepper_kernel(%arg0: i32, %arg1: memref<1xi32, #tpu.memory_space<smem>>, %arg2: memref<16x128xf32, #tpu.memory_space<vmem>>, %arg3: memref<16x128xf32, #tpu.memory_space<vmem>>) attributes {dimension_semantics = [#tpu.dimension_semantics<parallel>], iteration_bounds = array<i64: 1>, scalar_prefetch = 1 : i64, scratch_operands = 0 : i64, tpu.core_type = #tpu.core_type<tc>, window_params = [{transform_indices = @transform_0, window_bounds = array<i64: 16, 128>}, {transform_indices = @transform_1, window_bounds = array<i64: 16, 128>}]} {
    %0 = tpu.iota {dimensions = array<i32: 0>} : vector<16x128xi32>
    %1 = tpu.iota {dimensions = array<i32: 1>} : vector<16x128xi32>
    %c16_i32 = arith.constant 16 : i32
    %2 = arith.muli %arg0, %c16_i32 : i32
    %3 = vector.broadcast %2 : i32 to vector<16x128xi32>
    %4 = arith.addi %3, %0 : vector<16x128xi32>
    %c128_i32 = arith.constant 128 : i32
    %5 = vector.broadcast %c128_i32 : i32 to vector<16x128xi32>
    %6 = arith.muli %4, %5 : vector<16x128xi32>
    %7 = arith.addi %6, %1 : vector<16x128xi32>
    %c0 = arith.constant 0 : index
    %8 = memref.load %arg1[%c0] : memref<1xi32, #tpu.memory_space<smem>>
    %c-1640531527_i32 = arith.constant -1640531527 : i32
    %9 = arith.muli %8, %c-1640531527_i32 : i32
    %10 = vector.broadcast %9 : i32 to vector<16x128xi32>
    %11 = arith.xori %7, %10 : vector<16x128xi32>
    %c16_i32_0 = arith.constant 16 : i32
    %12 = vector.broadcast %c16_i32_0 : i32 to vector<16x128xi32>
    %13 = arith.shrui %11, %12 : vector<16x128xi32>
    %14 = arith.xori %11, %13 : vector<16x128xi32>
    %c2146121005_i32 = arith.constant 2146121005 : i32
    %15 = vector.broadcast %c2146121005_i32 : i32 to vector<16x128xi32>
    %16 = arith.muli %14, %15 : vector<16x128xi32>
    %c15_i32 = arith.constant 15 : i32
    %17 = vector.broadcast %c15_i32 : i32 to vector<16x128xi32>
    %18 = arith.shrui %16, %17 : vector<16x128xi32>
    %19 = arith.xori %16, %18 : vector<16x128xi32>
    %c-2073254261_i32 = arith.constant -2073254261 : i32
    %20 = vector.broadcast %c-2073254261_i32 : i32 to vector<16x128xi32>
    %21 = arith.muli %19, %20 : vector<16x128xi32>
    %c16_i32_1 = arith.constant 16 : i32
    %22 = vector.broadcast %c16_i32_1 : i32 to vector<16x128xi32>
    %23 = arith.shrui %21, %22 : vector<16x128xi32>
    %24 = arith.xori %21, %23 : vector<16x128xi32>
    %c8_i32 = arith.constant 8 : i32
    %25 = vector.broadcast %c8_i32 : i32 to vector<16x128xi32>
    %26 = arith.shrui %24, %25 : vector<16x128xi32>
    %c0_2 = arith.constant 0 : index
    %c0_3 = arith.constant 0 : index
    %27 = vector.load %arg2[%c0_2, %c0_3] : memref<16x128xf32, #tpu.memory_space<vmem>>, vector<16x128xf32>
    %c167772_i32 = arith.constant 167772 : i32
    %28 = vector.broadcast %c167772_i32 : i32 to vector<16x128xi32>
    %29 = arith.cmpi slt, %26, %28 : vector<16x128xi32>
    %c335544_i32 = arith.constant 335544 : i32
    %30 = vector.broadcast %c335544_i32 : i32 to vector<16x128xi32>
    %31 = arith.cmpi slt, %26, %30 : vector<16x128xi32>
    %cst = arith.constant 0.000000e+00 : f32
    %32 = vector.broadcast %cst : f32 to vector<16x128xf32>
    %33 = arith.select %31, %32, %27 : vector<16x128xi1>, vector<16x128xf32>
    %cst_4 = arith.constant 1.000000e+00 : f32
    %34 = vector.broadcast %cst_4 : f32 to vector<16x128xf32>
    %35 = arith.select %29, %34, %33 : vector<16x128xi1>, vector<16x128xf32>
    %c0_5 = arith.constant 0 : index
    %c0_6 = arith.constant 0 : index
    %36 = vector.load %arg3[%c0_5, %c0_6] : memref<16x128xf32, #tpu.memory_space<vmem>>, vector<16x128xf32>
    tpu.vector_store %arg3[%c0_5, %c0_6], %35 {strides = array<i32>} : memref<16x128xf32, #tpu.memory_space<vmem>>, vector<16x128xf32>,
    return
  }
  func.func @transform_0(%arg0: i32, %arg1: memref<1xi32, #tpu.memory_space<smem>>) -> (i32, i32) {
    %c0_i32 = arith.constant 0 : i32
    %c0_i32_0 = arith.constant 0 : i32
    return %arg0, %c0_i32 : i32, i32
  }
  func.func @transform_1(%arg0: i32, %arg1: memref<1xi32, #tpu.memory_space<smem>>) -> (i32, i32) {
    %c0_i32 = arith.constant 0 : i32
    %c0_i32_0 = arith.constant 0 : i32
    return %arg0, %c0_i32 : i32, i32
  }
}

</mosaic_0001>

<llo_original>
// kernel: tpu_custom_call.1
$region0: #{tpu_custom_call.1}
  #allocation0 [shape = 'u32[]', space=smem, size = 0x4, offset = 0x4, fixed_abs, tag = 'smem constant byte address 0x4 - core index']
  #allocation1 [shape = 'u32[144,128]{1,0:T(1,128)}', space=vmem, size = 0x12000, scoped, tag = 'internal scratch']
  #allocation2 [shape = 's32[1]{0}', space=sflag, size = 0x4, scoped, tag = 'scoped memory for tpu_custom_call.1']
  #allocation3 [shape = 's32[1]{0:T(128)S(6)}', space=smem, size = 0x200, scoped, tag = 'prefetched SMEM operand 0']
  %s0 = inlined_call_operand.<no memory space> [shape: s32[1], index: 0, kind: input, shape index: {}]
  %s1 = inlined_call_operand.hbm [shape: f32[16,128], index: 1, kind: input, shape index: {}]
  %s2 = inlined_call_operand.hbm [shape: f32[16,128], index: 2, kind: output, shape index: {}]
  %s3 = sld [smem:[#allocation0]]
  $region18: #{tpu_custom_call.1} parent=0
    _
  %s5 = ssub.s32 1, %s3
  %s6 = scalar_select 0, %s5, %s3
  %7 = sst [smem:[#allocation3]] %s0
  $region1: #{tpu_custom_call.1} parent=0
    #allocation4 [shape = 'u8[8192]{0}', space=vmem, size = 0x2000, scoped, tag = 'input window, operand 1, single buffered']
    #allocation5 [shape = 's32[1]{0}', space=sflag, size = 0x4, scoped, tag = 'scoped memory for tpu_custom_call.1']
    #allocation6 [shape = 's32[1]{0}', space=sflag, size = 0x4, scoped, tag = 'scoped memory for tpu_custom_call.1']
    #allocation7 [shape = 'u8[8192]{0}', space=vmem, size = 0x2000, scoped, tag = 'output window, operand 0, single buffered']
    %8 = vsyncpa [#allocation5], 0
    %9 = vsyncpa [#allocation6], 0
    // Predicated region
    $region2: #{tpu_custom_call.1} parent=1 // pred_check
      _
    $region3: #{tpu_custom_call.1} parent=1 // pred_check_branch
      %11 = sbr.rel (0) target = $region5
    $region4: #{tpu_custom_call.1} parent=1 // pred_region
      %s13 = ssub.s32 256, 256
      %14 = vsyncadd [#allocation5], %s13
      %s15 = sshll.u32 [#allocation4], 4
      %s16 = int_to_ptr.vmem [resolvable:$true] %s15
      %21 = dma.hbm_to_vmem [thread:$0]  %s1, 256, %s16, [#allocation5], 128, 128, 8
    $region5: #{tpu_custom_call.1} parent=1 // pred_fallthru
      _
    // Predicated region
    $region6: #{tpu_custom_call.1} parent=1 // pred_check
      _
    $region7: #{tpu_custom_call.1} parent=1 // pred_check_branch
      %23 = sbr.rel (0) target = $region9
    $region8: #{tpu_custom_call.1} parent=1 // pred_region
      %24 = dma.done [#allocation5], 256
    $region9: #{tpu_custom_call.1} parent=1 // pred_fallthru
      _
    %v25 = vlaneseq
    %v26 = vshrl.u32 %v25, 7
    %v27 = vadd.s32 %v26, 8
    %v28 = vlaneseq
    %v29 = vand.u32 %v28, 127
    %s30 = smul.u32 0, 16
    %v31 = vstv %s30
    %v32 = vadd.s32 %v31, %v26
    %v33 = vadd.s32 %v31, %v27
    %v34 = vmul.u32 %v32, 128
    %v35 = vmul.u32 %v33, 128
    %v36 = vadd.s32 %v34, %v29
    %v37 = vadd.s32 %v35, %v29
    %s38 = sld [smem:[#allocation3]]
    %s39 = smul.u32 %s38, 2654435769
    %v40 = vstv %s39
    %v41 = vxor.u32 %v36, %v40
    %v42 = vxor.u32 %v37, %v40
    %v43 = vshrl.u32 %v41, 16
    %v44 = vshrl.u32 %v42, 16
    %v45 = vxor.u32 %v41, %v43
    %v46 = vxor.u32 %v42, %v44
    %v47 = vmul.u32 %v45, 2146121005
    %v48 = vmul.u32 %v46, 2146121005
    %v49 = vshrl.u32 %v47, 15
    %v50 = vshrl.u32 %v48, 15
    %v51 = vxor.u32 %v47, %v49
    %v52 = vxor.u32 %v48, %v50
    %v53 = vmul.u32 %v51, 2221713035
    %v54 = vmul.u32 %v52, 2221713035
    %v55 = vshrl.u32 %v53, 16
    %v56 = vshrl.u32 %v54, 16
    %v57 = vxor.u32 %v53, %v55
    %v58 = vxor.u32 %v54, %v56
    %v59 = vshrl.u32 %v57, 8
    %v60 = vshrl.u32 %v58, 8
    %v61 = vld [vmem:[#allocation4] sm:$0xff]
    %v62 = vld [vmem:[#allocation4 + $0x8] sm:$0xff]
    %vm63 = vcmp.lt.s32.totalorder %v59, 167772
    %vm64 = vcmp.lt.s32.totalorder %v60, 167772
    %vm65 = vcmp.lt.s32.totalorder %v59, 335544
    %vm66 = vcmp.lt.s32.totalorder %v60, 335544
    %v67 = vsel %vm65, 0.0, %v61
    %v68 = vsel %vm66, 0.0, %v62
    %v69 = vsel %vm63, 1.0, %v67
    %v70 = vsel %vm64, 1.0, %v68
    %71 = vst [vmem:[#allocation7] sm:$0xff] %v69
    %72 = vst [vmem:[#allocation7 + $0x8] sm:$0xff] %v70
    // Predicated region
    $region10: #{tpu_custom_call.1} parent=1 // pred_check
      _
    $region11: #{tpu_custom_call.1} parent=1 // pred_check_branch
      %74 = sbr.rel (0) target = $region13
    $region12: #{tpu_custom_call.1} parent=1 // pred_region
      %s76 = ssub.s32 256, 256
      %77 = vsyncadd [#allocation6], %s76
      %s78 = sshll.u32 [#allocation7], 4
      %s79 = int_to_ptr.vmem [resolvable:$true] %s78
      %84 = dma.vmem_to_hbm [thread:$0]  %s79, 256, %s2, [#allocation6], 128, 128, 8
    $region13: #{tpu_custom_call.1} parent=1 // pred_fallthru
      _
    // Predicated region
    $region14: #{tpu_custom_call.1} parent=1 // pred_check
      _
    $region15: #{tpu_custom_call.1} parent=1 // pred_check_branch
      %86 = sbr.rel (0) target = $region17
    $region16: #{tpu_custom_call.1} parent=1 // pred_region
      %87 = dma.done [#allocation6], 256
    $region17: #{tpu_custom_call.1} parent=1 // pred_fallthru
      _
    %88 = vsyncpa [#allocation5], 1
    %89 = vsyncpa [#allocation6], 1

</llo_original>
